<compile_context>
chip_gen: v7x
topology: tpu7x:2x2x1
jax: 0.10.0
libtpu: 0.0.40
codegen_flags: <defaults>
</compile_context>

<pallas_src>
import functools

import jax
import jax.numpy as jnp
from jax import lax
from jax.experimental import pallas as pl
from jax.experimental.pallas import tpu as pltpu


def _round_up(v, m):
    return ((v + m - 1) // m) * m


def _chip_info():
    """Returns (tensorcores_per_chip, per-block byte budget, vmem limit cap)."""
    kind = ""
    try:
        kind = jax.devices()[0].device_kind.lower()
    except Exception:
        pass
    is_v7 = "v7" in kind
    num_cores = 2 if is_v7 else 1
    block_budget = (8 << 20) if is_v7 else (4 << 20)
    try:
        phys_vmem = int(pltpu.get_tpu_info().vmem_capacity_bytes)
    except Exception:
        phys_vmem = (64 << 20) if is_v7 else (128 << 20)
    # ~40 MiB on v7x (64 MiB physical per TC), ~80 MiB on v5e/v6e (128 MiB).
    vmem_cap = min((phys_vmem * 5) // 8, 96 << 20)
    return num_cores, block_budget, vmem_cap


def _oce_kernel(scal_ref, x_ref, out_ref, acc_ref, *, n_total, tile_n, need_mask):
    i = pl.program_id(1)              # reduction axis (paths)
    last = pl.num_programs(1) - 1

    @pl.when(i == 0)
    def _():
        acc_ref[...] = jnp.zeros_like(acc_ref)

    c = scal_ref[1]                   # (target - w): exp(-(x - target + w)) == exp(c - x)

    def accumulate(mask_rows):
        # 1 VPU subtract + 1 EUP exp per element in the hot loop.
        e = jnp.exp(c - x_ref[...].astype(jnp.float32))
        if mask_rows:
            # Only the final (possibly OOB-padded) N tile pays for the mask.
            row = i * tile_n + lax.broadcasted_iota(jnp.int32, e.shape, 0)
            e = jnp.where(row < n_total, e, 0.0)
        # Regroup whole 8-row sublane tiles (no cross-(8,128) boundary move);
        # the axis-0 sum is pure VALU vreg adds into the resident accumulator.
        acc_ref[...] += jnp.sum(e.reshape(tile_n // 8, 8, e.shape[-1]), axis=0)

    if need_mask:
        @pl.when(i != last)
        def _():
            accumulate(False)

        @pl.when(i == last)
        def _():
            accumulate(True)
    else:
        accumulate(False)

    @pl.when(i == last)
    def _():
        w = scal_ref[0]
        total = jnp.sum(acc_ref[...], axis=0, keepdims=True)   # one small XLU reduce
        # mean(1 - exp(-(x - t + w))) == 1 - total/N  ->  forward == (w - 1) + total/N
        out_ref[...] = ((w - 1.0) + total * jnp.float32(1.0 / n_total)).astype(out_ref.dtype)


def oce_forward(x, w, target=0.0, *, tile_n=None, tile_d=None):
    """OCE loss: w - (1 - exp(-(x - target + w))).mean(0).

    x: [N, D] float array; w: scalar parameter; returns [D] array.
    """
    n, d = x.shape
    itemsize = jnp.dtype(x.dtype).itemsize
    num_cores, block_budget, vmem_cap = _chip_info()

    # ---- tile_d: full D (contiguous rows), split only for megacore ----------
    if tile_d is None:
        tile_d = d
        if num_cores >= 2 and d >= 256 and d % (128 * num_cores) == 0:
            tile_d = d // num_cores     # grid_d == num_cores -> both TCs busy
    assert tile_d == d or (d % tile_d == 0 and tile_d % 128 == 0)

    # ---- tile_n: ~4 MiB (v5e/v6e) / ~8 MiB (v7x) per x block ----------------
    row_mult = 8 * max(1, 4 // itemsize)   # sublane packing: f32 8, bf16 16, i8 32
    if tile_n is None:
        target_rows = max(row_mult, block_budget // max(1, tile_d * itemsize))
        tile_n = min(_round_up(target_rows, row_mult), _round_up(n, row_mult))
        # Safety: shrink if double-buffered blocks would overflow the VMEM cap.
        while tile_n > row_mult and 2 * tile_n * tile_d * itemsize > vmem_cap - (4 << 20):
            tile_n = _round_up(tile_n // 2, row_mult)
    assert tile_n % 8 == 0, "tile_n must be a multiple of 8"

    grid_d = pl.cdiv(d, tile_d)
    grid_n = pl.cdiv(n, tile_n)
    need_mask = (n % tile_n) != 0

    # Folded scalars in SMEM: [w, target - w]
    w32 = jnp.asarray(w, jnp.float32)
    t32 = jnp.asarray(target, jnp.float32)
    scal = jnp.stack([w32, t32 - w32])

    kernel = functools.partial(
        _oce_kernel, n_total=n, tile_n=tile_n, need_mask=need_mask
    )

    vmem_needed = (2 * tile_n * tile_d * itemsize   # double-buffered x block
                   + 2 * tile_d * itemsize          # out block
                   + 8 * tile_d * 4)                # accumulator
    vmem_limit = int(min(max(2 * vmem_needed, 16 << 20), vmem_cap))

    out = pl.pallas_call(
        kernel,
        out_shape=jax.ShapeDtypeStruct((1, d), x.dtype),
        grid_spec=pltpu.PrefetchScalarGridSpec(
            num_scalar_prefetch=0,
            grid=(grid_d, grid_n),  # D parallel (leading), N reduction (last)
            in_specs=[
                pl.BlockSpec(memory_space=pltpu.MemorySpace.SMEM),    # [w, target - w]
                pl.BlockSpec((tile_n, tile_d), lambda j, i: (i, j)),  # x tile
            ],
            out_specs=pl.BlockSpec((1, tile_d), lambda j, i: (0, j)),
            scratch_shapes=[pltpu.VMEM((8, tile_d), jnp.float32)],
        ),
        compiler_params=pltpu.CompilerParams(
            dimension_semantics=("parallel", "arbitrary"),
            vmem_limit_bytes=vmem_limit,
        ),
    )(scal, x)
    return out[0]  # squeeze -> [D], matches torch .mean(0)


# TODO(synk): OCE.cash() (bisection inversion of the loss) has no clean single-kernel
# Pallas equivalent; only forward() is implemented here.

if __name__ == "__main__":
    key = jax.random.PRNGKey(0)
    w = jnp.float32(0.0)  # Parameter(torch.tensor(0.0))

    def ref_fn(x, target):
        return w - jnp.mean(1.0 - jnp.exp(-(x - target + w)), axis=0)

    # Test 1: aligned shapes
    N, D = 128, 128
    x = jax.random.normal(key, (N, D), dtype=jnp.float32)
    out = jax.block_until_ready(oce_forward(x, w, 0.0))
    assert out.shape == (D,)
    assert jnp.allclose(out, ref_fn(x, 0.0), atol=1e-5, rtol=1e-5), "mismatch (aligned)"

    # Test 2: N not divisible by the tile (exercises the masked last N tile)
    N2, D2 = 100, 256
    x2 = jax.random.normal(jax.random.PRNGKey(1), (N2, D2), dtype=jnp.float32)
    out2 = jax.block_until_ready(oce_forward(x2, w, 0.25))
    assert out2.shape == (D2,)
    assert jnp.allclose(out2, ref_fn(x2, 0.25), atol=1e-5, rtol=1e-5), "mismatch (ragged N)"

    # Test 3: D not a multiple of 128 (full-D block path)
    N3, D3 = 64, 40
    x3 = jax.random.normal(jax.random.PRNGKey(2), (N3, D3), dtype=jnp.float32)
    out3 = jax.block_until_ready(oce_forward(x3, w, -0.1))
    assert out3.shape == (D3,)
    assert jnp.allclose(out3, ref_fn(x3, -0.1), atol=1e-5, rtol=1e-5), "mismatch (small D)"

    print("KERNEL_OK")
</pallas_src>

<mosaic_0001>
module attributes {stable_mosaic.version = 11 : i64} {
  func.func @_oce_kernel(%arg0: i32, %arg1: i32, %arg2: memref<2xf32, #tpu.memory_space<smem>>, %arg3: memref<128x128xf32, #tpu.memory_space<vmem>>, %arg4: memref<1x128xf32, #tpu.memory_space<vmem>>, %arg5: memref<8x128xf32, #tpu.memory_space<vmem>>) attributes {dimension_semantics = [#tpu.dimension_semantics<parallel>, #tpu.dimension_semantics<arbitrary>], iteration_bounds = array<i64: 1, 1>, scalar_prefetch = 0 : i64, scratch_operands = 1 : i64, tpu.core_type = #tpu.core_type<tc>, window_params = [{transform_indices = @transform_0, window_bounds = array<i64: 2>}, {transform_indices = @transform_1, window_bounds = array<i64: 128, 128>}, {transform_indices = @transform_2, window_bounds = array<i64: 1, 128>}]} {
    %c0_i32 = arith.constant 0 : i32
    %0 = arith.cmpi eq, %arg1, %c0_i32 : i32
    %1 = arith.extui %0 : i1 to i32
    %c0_i32_0 = arith.constant 0 : i32
    %2 = arith.cmpi ne, %1, %c0_i32_0 : i32
    scf.if %2 {
      %cst_8 = arith.constant 0.000000e+00 : f32
      %16 = vector.broadcast %cst_8 : f32 to vector<8x128xf32>
      %c0_9 = arith.constant 0 : index
      %c0_10 = arith.constant 0 : index
      %17 = vector.load %arg5[%c0_9, %c0_10] : memref<8x128xf32, #tpu.memory_space<vmem>>, vector<8x128xf32>
      tpu.vector_store %arg5[%c0_9, %c0_10], %16 {strides = array<i32>} : memref<8x128xf32, #tpu.memory_space<vmem>>, vector<8x128xf32>,
    } else {
    }
    %c1 = arith.constant 1 : index
    %3 = memref.load %arg2[%c1] : memref<2xf32, #tpu.memory_space<smem>>
    %c0 = arith.constant 0 : index
    %c0_1 = arith.constant 0 : index
    %4 = vector.load %arg3[%c0, %c0_1] : memref<128x128xf32, #tpu.memory_space<vmem>>, vector<128x128xf32>
    %5 = vector.broadcast %3 : f32 to vector<128x128xf32>
    %6 = arith.subf %5, %4 : vector<128x128xf32>
    %7 = math.exp %6 : vector<128x128xf32>
    %c0_2 = arith.constant 0 : index
    %c0_3 = arith.constant 0 : index
    %8 = vector.load %arg5[%c0_2, %c0_3] : memref<8x128xf32, #tpu.memory_space<vmem>>, vector<8x128xf32>
    %9 = vector.shape_cast %7 : vector<128x128xf32> to vector<16x8x128xf32>
    %cst = arith.constant dense<0.000000e+00> : vector<8x128xf32>
    %10 = vector.multi_reduction <add>, %9, %cst [0] : vector<16x8x128xf32> to vector<8x128xf32>
    %11 = arith.addf %8, %10 : vector<8x128xf32>
    %c0_4 = arith.constant 0 : index
    %c0_5 = arith.constant 0 : index
    %12 = vector.load %arg5[%c0_4, %c0_5] : memref<8x128xf32, #tpu.memory_space<vmem>>, vector<8x128xf32>
    tpu.vector_store %arg5[%c0_4, %c0_5], %11 {strides = array<i32>} : memref<8x128xf32, #tpu.memory_space<vmem>>, vector<8x128xf32>,
    %c0_i32_6 = arith.constant 0 : i32
    %13 = arith.cmpi eq, %arg1, %c0_i32_6 : i32
    %14 = arith.extui %13 : i1 to i32
    %c0_i32_7 = arith.constant 0 : i32
    %15 = arith.cmpi ne, %14, %c0_i32_7 : i32
    scf.if %15 {
      %c0_8 = arith.constant 0 : index
      %16 = memref.load %arg2[%c0_8] : memref<2xf32, #tpu.memory_space<smem>>
      %c0_9 = arith.constant 0 : index
      %c0_10 = arith.constant 0 : index
      %17 = vector.load %arg5[%c0_9, %c0_10] : memref<8x128xf32, #tpu.memory_space<vmem>>, vector<8x128xf32>
      %cst_11 = arith.constant dense<0.000000e+00> : vector<128xf32>
      %18 = vector.multi_reduction <add>, %17, %cst_11 [0] : vector<8x128xf32> to vector<128xf32>
      %19 = vector.shape_cast %18 : vector<128xf32> to vector<1x128xf32>
      %cst_12 = arith.constant 1.000000e+00 : f32
      %20 = arith.subf %16, %cst_12 : f32
      %cst_13 = arith.constant 7.812500e-03 : f32
      %21 = vector.broadcast %cst_13 : f32 to vector<1x128xf32>
      %22 = arith.mulf %19, %21 : vector<1x128xf32>
      %23 = vector.broadcast %20 : f32 to vector<1x128xf32>
      %24 = arith.addf %23, %22 : vector<1x128xf32>
      %c0_14 = arith.constant 0 : index
      %c0_15 = arith.constant 0 : index
      %25 = vector.load %arg4[%c0_14, %c0_15] : memref<1x128xf32, #tpu.memory_space<vmem>>, vector<1x128xf32>
      tpu.vector_store %arg4[%c0_14, %c0_15], %24 {strides = array<i32>} : memref<1x128xf32, #tpu.memory_space<vmem>>, vector<1x128xf32>,
    } else {
    }
    return
  }
  func.func @transform_0(%arg0: i32, %arg1: i32) -> i32 {
    %c0_i32 = arith.constant 0 : i32
    %c0_i32_0 = arith.constant 0 : i32
    return %c0_i32 : i32
  }
  func.func @transform_1(%arg0: i32, %arg1: i32) -> (i32, i32) {
    %c0_i32 = arith.constant 0 : i32
    return %arg1, %arg0 : i32, i32
  }
  func.func @transform_2(%arg0: i32, %arg1: i32) -> (i32, i32) {
    %c0_i32 = arith.constant 0 : i32
    %c0_i32_0 = arith.constant 0 : i32
    return %c0_i32, %arg0 : i32, i32
  }
}

</mosaic_0001>

<llo_original>
// kernel: tpu_custom_call.1
$region0: #{tpu_custom_call.1}
  #allocation0 [shape = 'u32[]', space=smem, size = 0x4, offset = 0x4, fixed_abs, tag = 'smem constant byte address 0x4 - core index']
  #allocation1 [shape = 'u32[144,128]{1,0:T(1,128)}', space=vmem, size = 0x12000, scoped, tag = 'internal scratch']
  #allocation2 [shape = 'f32[8,128]{1,0:T(8,128)}', space=vmem, size = 0x1000, scoped, tag = 'scratch operand']
  %s0 = inlined_call_operand.hbm [shape: f32[2], index: 0, kind: input, shape index: {}]
  %s1 = inlined_call_operand.hbm [shape: f32[128,128], index: 1, kind: input, shape index: {}]
  %s2 = inlined_call_operand.hbm [shape: f32[1,128], index: 2, kind: output, shape index: {}]
  %s3 = sld [smem:[#allocation0]]
  $region34: #{tpu_custom_call.1} parent=0
    _
  %s5 = ssub.s32 1, %s3
  %s6 = scalar_select 0, %s5, %s3
  $region1: #{tpu_custom_call.1} parent=0
    #allocation3 [shape = 'u8[512]{0}', space=smem, size = 0x200, scoped, tag = 'input window, operand 0, single buffered']
    #allocation4 [shape = 's32[1]{0}', space=sflag, size = 0x4, scoped, tag = 'scoped memory for tpu_custom_call.1']
    #allocation5 [shape = 's32[1]{0}', space=sflag, size = 0x4, scoped, tag = 'scoped memory for tpu_custom_call.1']
    #allocation6 [shape = 's32[1]{0}', space=sflag, size = 0x4, scoped, tag = 'scoped memory for tpu_custom_call.1']
    #allocation7 [shape = 'u8[65536]{0}', space=vmem, size = 0x10000, scoped, tag = 'input window, operand 1, single buffered']
    #allocation8 [shape = 'u8[512]{0}', space=vmem, size = 0x400, scoped, tag = 'output window, operand 0, single buffered']
    %7 = vsyncpa [#allocation6], 0
    %8 = vsyncpa [#allocation4], 0
    %9 = vsyncpa [#allocation5], 0
    // Predicated region
    $region2: #{tpu_custom_call.1} parent=1 // pred_check
      _
    $region3: #{tpu_custom_call.1} parent=1 // pred_check_branch
      %11 = sbr.rel (0) target = $region5
    $region4: #{tpu_custom_call.1} parent=1 // pred_region
      %s13 = ssub.s32 16, 16
      %14 = vsyncadd [#allocation6], %s13
      %17 = dma.hbm_to_smem %s0, 16, [#allocation3], [#allocation6]
    $region5: #{tpu_custom_call.1} parent=1 // pred_fallthru
      _
    // Predicated region
    $region6: #{tpu_custom_call.1} parent=1 // pred_check
      _
    $region7: #{tpu_custom_call.1} parent=1 // pred_check_branch
      %19 = sbr.rel (0) target = $region9
    $region8: #{tpu_custom_call.1} parent=1 // pred_region
      %s21 = ssub.s32 2048, 2048
      %22 = vsyncadd [#allocation4], %s21
      %s23 = sshll.u32 [#allocation7], 4
      %s24 = int_to_ptr.vmem [resolvable:$true] %s23
      %29 = dma.hbm_to_vmem [thread:$0]  %s1, 2048, %s24, [#allocation4], 128, 128, 8
    $region9: #{tpu_custom_call.1} parent=1 // pred_fallthru
      _
    // Predicated region
    $region10: #{tpu_custom_call.1} parent=1 // pred_check
      _
    $region11: #{tpu_custom_call.1} parent=1 // pred_check_branch
      %31 = sbr.rel (0) target = $region13
    $region12: #{tpu_custom_call.1} parent=1 // pred_region
      %32 = dma.done [#allocation6], 16
    $region13: #{tpu_custom_call.1} parent=1 // pred_fallthru
      _
    // Predicated region
    $region14: #{tpu_custom_call.1} parent=1 // pred_check
      _
    $region15: #{tpu_custom_call.1} parent=1 // pred_check_branch
      %34 = sbr.rel (0) target = $region17
    $region16: #{tpu_custom_call.1} parent=1 // pred_region
      %35 = dma.done [#allocation4], 2048
    $region17: #{tpu_custom_call.1} parent=1 // pred_fallthru
      _
    %36 = sfence
    %p37 = scmp.eq.s32.totalorder 0, 0
    // Predicated region
    $region18: #{tpu_custom_call.1} parent=1 // pred_check
      %p38 = pneg %p37
    $region19: #{tpu_custom_call.1} parent=1 // pred_check_branch
      %40 = sbr.rel (%p38) target = $region21
    $region20: #{tpu_custom_call.1} parent=1 // pred_region
      %41 = vst [vmem:[#allocation2] sm:$0xff] 0.0
    $region21: #{tpu_custom_call.1} parent=1 // pred_fallthru
      _
    %s42 = sld [smem:[#allocation3 + $0x1]]
    %v43 = vld [vmem:[#allocation7] sm:$0xff]
    %v44 = vld [vmem:[#allocation7 + $0x8] sm:$0xff]
    %v45 = vld [vmem:[#allocation7 + $0x10] sm:$0xff]
    %v46 = vld [vmem:[#allocation7 + $0x18] sm:$0xff]
    %v47 = vld [vmem:[#allocation7 + $0x20] sm:$0xff]
    %v48 = vld [vmem:[#allocation7 + $0x28] sm:$0xff]
    %v49 = vld [vmem:[#allocation7 + $0x30] sm:$0xff]
    %v50 = vld [vmem:[#allocation7 + $0x38] sm:$0xff]
    %v51 = vld [vmem:[#allocation7 + $0x40] sm:$0xff]
    %v52 = vld [vmem:[#allocation7 + $0x48] sm:$0xff]
    %v53 = vld [vmem:[#allocation7 + $0x50] sm:$0xff]
    %v54 = vld [vmem:[#allocation7 + $0x58] sm:$0xff]
    %v55 = vld [vmem:[#allocation7 + $0x60] sm:$0xff]
    %v56 = vld [vmem:[#allocation7 + $0x68] sm:$0xff]
    %v57 = vld [vmem:[#allocation7 + $0x70] sm:$0xff]
    %v58 = vld [vmem:[#allocation7 + $0x78] sm:$0xff]
    %v59 = vstv %s42
    %v60 = vsub.f32 %v59, %v43
    %v61 = vsub.f32 %v59, %v44
    %v62 = vsub.f32 %v59, %v45
    %v63 = vsub.f32 %v59, %v46
    %v64 = vsub.f32 %v59, %v47
    %v65 = vsub.f32 %v59, %v48
    %v66 = vsub.f32 %v59, %v49
    %v67 = vsub.f32 %v59, %v50
    %v68 = vsub.f32 %v59, %v51
    %v69 = vsub.f32 %v59, %v52
    %v70 = vsub.f32 %v59, %v53
    %v71 = vsub.f32 %v59, %v54
    %v72 = vsub.f32 %v59, %v55
    %v73 = vsub.f32 %v59, %v56
    %v74 = vsub.f32 %v59, %v57
    %v75 = vsub.f32 %v59, %v58
    %v76 = vmul.f32 %v60, 1.442695
    %v77 = vpow.pop %v76
    %v78 = vmul.f32 %v61, 1.442695
    %v79 = vpow.pop %v78
    %v80 = vmul.f32 %v62, 1.442695
    %v81 = vpow.pop %v80
    %v82 = vmul.f32 %v63, 1.442695
    %v83 = vpow.pop %v82
    %v84 = vmul.f32 %v64, 1.442695
    %v85 = vpow.pop %v84
    %v86 = vmul.f32 %v65, 1.442695
    %v87 = vpow.pop %v86
    %v88 = vmul.f32 %v66, 1.442695
    %v89 = vpow.pop %v88
    %v90 = vmul.f32 %v67, 1.442695
    %v91 = vpow.pop %v90
    %v92 = vmul.f32 %v68, 1.442695
    %v93 = vpow.pop %v92
    %v94 = vmul.f32 %v69, 1.442695
    %v95 = vpow.pop %v94
    %v96 = vmul.f32 %v70, 1.442695
    %v97 = vpow.pop %v96
    %v98 = vmul.f32 %v71, 1.442695
    %v99 = vpow.pop %v98
    %v100 = vmul.f32 %v72, 1.442695
    %v101 = vpow.pop %v100
    %v102 = vmul.f32 %v73, 1.442695
    %v103 = vpow.pop %v102
    %v104 = vmul.f32 %v74, 1.442695
    %v105 = vpow.pop %v104
    %v106 = vmul.f32 %v75, 1.442695
    %v107 = vpow.pop %v106
    %v108 = vld [vmem:[#allocation2] sm:$0xff]
    %v109 = vadd.f32 %v77, %v79
    %v110 = vadd.f32 %v109, %v81
    %v111 = vadd.f32 %v110, %v83
    %v112 = vadd.f32 %v111, %v85
    %v113 = vadd.f32 %v112, %v87
    %v114 = vadd.f32 %v113, %v89
    %v115 = vadd.f32 %v114, %v91
    %v116 = vadd.f32 %v115, %v93
    %v117 = vadd.f32 %v116, %v95
    %v118 = vadd.f32 %v117, %v97
    %v119 = vadd.f32 %v118, %v99
    %v120 = vadd.f32 %v119, %v101
    %v121 = vadd.f32 %v120, %v103
    %v122 = vadd.f32 %v121, %v105
    %v123 = vadd.f32 %v122, %v107
    %v124 = vadd.f32 %v108, %v123
    %125 = vst [vmem:[#allocation2] sm:$0xff] %v124
    // Predicated region
    $region22: #{tpu_custom_call.1} parent=1 // pred_check
      %p126 = pneg %p37
    $region23: #{tpu_custom_call.1} parent=1 // pred_check_branch
      %128 = sbr.rel (%p126) target = $region25
    $region24: #{tpu_custom_call.1} parent=1 // pred_region
      %s129 = sld [smem:[#allocation3]]
      %v130 = vld [vmem:[#allocation2] sm:$0xff]
      %v131 = vrot.slane %v130, 4
      %v132 = vadd.f32 %v130, %v131
      %v133 = vrot.slane %v132, 2
      %v134 = vadd.f32 %v132, %v133
      %v135 = vrot.slane %v134, 1
      %v136 = vadd.f32 %v134, %v135
      %s137 = ssub.f32 %s129, 1.0
      %v138 = vmul.f32 %v136, 0.0078125
      %v139 = vstv %s137
      %v140 = vadd.f32 %v139, %v138
      %141 = vst [vmem:[#allocation8] sm:$0x1] %v140
    $region25: #{tpu_custom_call.1} parent=1 // pred_fallthru
      _
    // Predicated region
    $region26: #{tpu_custom_call.1} parent=1 // pred_check
      _
    $region27: #{tpu_custom_call.1} parent=1 // pred_check_branch
      %143 = sbr.rel (0) target = $region29
    $region28: #{tpu_custom_call.1} parent=1 // pred_region
      %s145 = ssub.s32 16, 16
      %146 = vsyncadd [#allocation5], %s145
      %s148 = sshll.u32 [#allocation8], 4
      %s149 = int_to_ptr.vmem [resolvable:$true] %s148
      %151 = dma.vmem_to_hbm [thread:$0]  %s149, 16, %s2, [#allocation5]
    $region29: #{tpu_custom_call.1} parent=1 // pred_fallthru
      _
    // Predicated region
    $region30: #{tpu_custom_call.1} parent=1 // pred_check
      _
    $region31: #{tpu_custom_call.1} parent=1 // pred_check_branch
      %153 = sbr.rel (0) target = $region33
    $region32: #{tpu_custom_call.1} parent=1 // pred_region
      %154 = dma.done [#allocation5], 16
    $region33: #{tpu_custom_call.1} parent=1 // pred_fallthru
      _
    %155 = vsyncpa [#allocation4], 1
    %156 = vsyncpa [#allocation5], 1
    %157 = vsyncpa [#allocation6], 1

</llo_original>
